<compile_context>
chip_gen: v7x
topology: tpu7x:2x2x1
jax: 0.10.0
libtpu: 0.0.40
codegen_flags: <defaults>
</compile_context>

<pallas_src>
import functools
import math

import jax
import jax.numpy as jnp
from jax import lax
from jax.experimental import pallas as pl
from jax.experimental.pallas import tpu as pltpu

LANES = 128
SUBLANES = 8
MAX_BLOCK_ROWS = 8192                 # (8192,128) f32 = 4 MiB / block
VMEM_LIMIT_BYTES = 32 * 1024 * 1024   # 2 inputs x 2 buffers x 4 MiB = 16 MiB used
LOG2 = math.log(2.0)
_SMALL_N = 64 * 1024                  # below this, plain jnp beats kernel overhead


def _elem_loss(pos, neg, *, neg_log_eps, is_regularized):
    """Per-element loss in f32. 2 exp + 1 log1p per element when regularized."""
    d = pos - neg
    # -log(clamp(sigmoid(d), eps, 1)) == softplus(-d_c), d_c = max(d, log(eps))
    d_c = jnp.maximum(d, -neg_log_eps)
    e1 = jnp.exp(-jnp.abs(d_c))
    if is_regularized:
        # -log(1 - tanh(s)) == softplus(2s) - log(2); merge the two log1p's.
        s2 = 2.0 * (pos + neg)
        e2 = jnp.exp(-jnp.abs(s2))
        return (jnp.maximum(-d_c, 0.0) + jnp.maximum(s2, 0.0) - LOG2
                + jnp.log1p(e1 + e2 + e1 * e2))
    return jnp.maximum(-d_c, 0.0) + jnp.log1p(e1)


def _bpr_zerosum_kernel(pos_ref, neg_ref, out_ref, *,
                        rows_valid, block_rows, blocks_per_split, nb_full,
                        neg_log_eps, is_regularized):
    s = pl.program_id(0)   # split ("parallel", megacore) axis
    i = pl.program_id(1)   # reduction ("arbitrary") axis within a split

    @pl.when(i == 0)
    def _init():
        out_ref[...] = jnp.zeros_like(out_ref)

    pos = pos_ref[...].astype(jnp.float32)
    neg = neg_ref[...].astype(jnp.float32)
    contrib = _elem_loss(pos, neg, neg_log_eps=neg_log_eps,
                         is_regularized=is_regularized)

    gbi = s * blocks_per_split + i            # global (unclamped) block index
    block_is_full = gbi < nb_full             # all rows of this block valid?

    def _accumulate(c):
        # (block_rows,128) -> (block_rows/8, 8, 128); axis-0 sum is pure VPU
        # vreg adds into the resident (8,128) accumulator (no XLU, no masked
        # stores).
        out_ref[...] += c.reshape(block_rows // SUBLANES, SUBLANES, LANES).sum(axis=0)

    @pl.when(block_is_full)
    def _steady():                            # no mask math in steady state
        _accumulate(contrib)

    @pl.when(jnp.logical_not(block_is_full))
    def _ragged():                            # last / overhang block only
        row = gbi * block_rows + lax.broadcasted_iota(
            jnp.int32, (block_rows, 1), 0)
        _accumulate(jnp.where(row < rows_valid, contrib, 0.0))


def _as_stream(x):
    """Flatten; keep f32/bf16/f16 streaming dtype, cast everything else to f32."""
    x = jnp.asarray(x).reshape(-1)
    if x.dtype not in (jnp.float32, jnp.bfloat16, jnp.float16):
        x = x.astype(jnp.float32)
    return x


def bpr_loss_zerosum_regularized(positive_scores, negative_scores,
                                 is_regularized=True, eps=1e-8,
                                 use_kernel=None):
    """Pallas TPU implementation of BPRLossZerosumRegularized.forward."""
    pos = _as_stream(positive_scores)
    neg = _as_stream(negative_scores)
    assert pos.shape == neg.shape
    n = int(pos.shape[0])
    assert n < 2 ** 31, "int32 index math in the kernel"
    neg_log_eps = float(-math.log(eps))
    is_regularized = bool(is_regularized)

    if use_kernel is None:
        use_kernel = n >= _SMALL_N

    rows = n // LANES          # full 128-lane rows handled by the kernel
    if (not use_kernel) or rows == 0:
        return jnp.sum(_elem_loss(pos.astype(jnp.float32),
                                  neg.astype(jnp.float32),
                                  neg_log_eps=neg_log_eps,
                                  is_regularized=is_regularized))

    n_main = rows * LANES
    if n_main != n:
        # <128-element tail: plain jnp (no pad copy of the big arrays).
        tail = jnp.sum(_elem_loss(pos[n_main:].astype(jnp.float32),
                                  neg[n_main:].astype(jnp.float32),
                                  neg_log_eps=neg_log_eps,
                                  is_regularized=is_regularized))
        pos_main, neg_main = pos[:n_main], neg[:n_main]
    else:
        tail = jnp.float32(0.0)
        pos_main, neg_main = pos, neg

    pos2d = pos_main.reshape(rows, LANES)     # free bitcast (contiguous)
    neg2d = neg_main.reshape(rows, LANES)

    block_rows = min(MAX_BLOCK_ROWS, -(-rows // SUBLANES) * SUBLANES)
    nb = -(-rows // block_rows)               # total blocks
    nb_full = rows // block_rows              # blocks with all rows valid
    splits = 2 if nb >= 2 else 1              # 2 TCs on v7x; serial elsewhere
    blocks_per_split = -(-nb // splits)

    kernel = functools.partial(
        _bpr_zerosum_kernel,
        rows_valid=rows,
        block_rows=int(block_rows),
        blocks_per_split=int(blocks_per_split),
        nb_full=int(nb_full),
        neg_log_eps=neg_log_eps,
        is_regularized=is_regularized,
    )

    # Overhang blocks of the last split (when nb doesn't divide evenly) are
    # clamped to a valid block and fully masked out inside the kernel.
    in_map = lambda s, i: (jnp.minimum(s * blocks_per_split + i, nb - 1), 0)
    out_map = lambda s, i: (s, 0)

    bytes_in = 2 * n_main * pos2d.dtype.itemsize
    cost = pl.CostEstimate(
        flops=(12 if is_regularized else 6) * n_main,
        transcendentals=(3 if is_regularized else 2) * n_main,
        bytes_accessed=bytes_in + splits * SUBLANES * LANES * 4,
    )

    partials = pl.pallas_call(
        kernel,
        out_shape=jax.ShapeDtypeStruct((splits * SUBLANES, LANES), jnp.float32),
        grid_spec=pltpu.PrefetchScalarGridSpec(
            num_scalar_prefetch=0,
            grid=(splits, blocks_per_split),
            in_specs=[
                pl.BlockSpec((block_rows, LANES), in_map),
                pl.BlockSpec((block_rows, LANES), in_map),
            ],
            out_specs=pl.BlockSpec((SUBLANES, LANES), out_map),
        ),
        compiler_params=pltpu.CompilerParams(
            dimension_semantics=("parallel", "arbitrary"),
            vmem_limit_bytes=VMEM_LIMIT_BYTES),
        cost_estimate=cost,
    )(pos2d, neg2d)

    # Final tiny (splits*8, 128) reduce + tail, done once outside the kernel.
    return jnp.sum(partials) + tail


def _reference(pos, neg, is_regularized=True, eps=1e-8):
    # Literal transcription of the PyTorch module's forward.
    d = jnp.clip(jax.nn.sigmoid(pos - neg), eps, 1.0)
    loss = -jnp.sum(jnp.log(d))
    if is_regularized:
        loss = loss - jnp.sum(jnp.log(1.0 - jnp.tanh(pos + neg)))
    return loss


if __name__ == "__main__":
    base_key = jax.random.PRNGKey(0)

    def run_case(n, is_regularized, scale=1.0):
        k1, k2 = jax.random.split(jax.random.fold_in(base_key, 2 * n + int(is_regularized)))
        pos = scale * jax.random.normal(k1, (n,), jnp.float32)
        neg = scale * jax.random.normal(k2, (n,), jnp.float32)
        out = bpr_loss_zerosum_regularized(pos, neg,
                                           is_regularized=is_regularized,
                                           eps=1e-8, use_kernel=True)
        out = jax.block_until_ready(out)
        ref = _reference(pos, neg, is_regularized, 1e-8)
        assert jnp.allclose(out, ref, rtol=1e-4, atol=1e-2), (n, is_regularized, out, ref)

    # Small, 128-unaligned: single ragged block + jnp tail (kernel forced).
    run_case(1000, True)
    run_case(1000, False)
    # Multi-block: 2-way split, full + ragged + overhang blocks + tail.
    run_case(2 * MAX_BLOCK_ROWS * LANES + 777, True, scale=0.5)

    print("KERNEL_OK")
</pallas_src>

<mosaic_0001>
module attributes {stable_mosaic.version = 11 : i64} {
  func.func @_bpr_zerosum_kernel(%arg0: i32, %arg1: i32, %arg2: memref<8x128xf32, #tpu.memory_space<vmem>>, %arg3: memref<8x128xf32, #tpu.memory_space<vmem>>, %arg4: memref<8x128xf32, #tpu.memory_space<vmem>>) attributes {dimension_semantics = [#tpu.dimension_semantics<parallel>, #tpu.dimension_semantics<arbitrary>], iteration_bounds = array<i64: 1, 1>, scalar_prefetch = 0 : i64, scratch_operands = 0 : i64, tpu.core_type = #tpu.core_type<tc>, window_params = [{transform_indices = @transform_0, window_bounds = array<i64: 8, 128>}, {transform_indices = @transform_1, window_bounds = array<i64: 8, 128>}, {transform_indices = @transform_2, window_bounds = array<i64: 8, 128>}]} {
    %c0_i32 = arith.constant 0 : i32
    %0 = arith.cmpi eq, %arg1, %c0_i32 : i32
    %1 = arith.extui %0 : i1 to i32
    %c0_i32_0 = arith.constant 0 : i32
    %2 = arith.cmpi ne, %1, %c0_i32_0 : i32
    scf.if %2 {
      %cst_14 = arith.constant 0.000000e+00 : f32
      %41 = vector.broadcast %cst_14 : f32 to vector<8x128xf32>
      %c0_15 = arith.constant 0 : index
      %c0_16 = arith.constant 0 : index
      %42 = vector.load %arg4[%c0_15, %c0_16] : memref<8x128xf32, #tpu.memory_space<vmem>>, vector<8x128xf32>
      tpu.vector_store %arg4[%c0_15, %c0_16], %41 {strides = array<i32>} : memref<8x128xf32, #tpu.memory_space<vmem>>, vector<8x128xf32>,
    } else {
    }
    %c0 = arith.constant 0 : index
    %c0_1 = arith.constant 0 : index
    %3 = vector.load %arg2[%c0, %c0_1] : memref<8x128xf32, #tpu.memory_space<vmem>>, vector<8x128xf32>
    %c0_2 = arith.constant 0 : index
    %c0_3 = arith.constant 0 : index
    %4 = vector.load %arg3[%c0_2, %c0_3] : memref<8x128xf32, #tpu.memory_space<vmem>>, vector<8x128xf32>
    %5 = arith.subf %3, %4 : vector<8x128xf32>
    %cst = arith.constant -18.420681 : f32
    %6 = vector.broadcast %cst : f32 to vector<8x128xf32>
    %7 = arith.maximumf %5, %6 : vector<8x128xf32>
    %8 = math.absf %7 : vector<8x128xf32>
    %cst_4 = arith.constant 0.000000e+00 : f32
    %9 = vector.broadcast %cst_4 : f32 to vector<8x128xf32>
    %10 = arith.subf %9, %8 : vector<8x128xf32>
    %11 = math.exp %10 : vector<8x128xf32>
    %12 = arith.addf %3, %4 : vector<8x128xf32>
    %cst_5 = arith.constant 2.000000e+00 : f32
    %13 = vector.broadcast %cst_5 : f32 to vector<8x128xf32>
    %14 = arith.mulf %13, %12 : vector<8x128xf32>
    %15 = math.absf %14 : vector<8x128xf32>
    %cst_6 = arith.constant 0.000000e+00 : f32
    %16 = vector.broadcast %cst_6 : f32 to vector<8x128xf32>
    %17 = arith.subf %16, %15 : vector<8x128xf32>
    %18 = math.exp %17 : vector<8x128xf32>
    %cst_7 = arith.constant 0.000000e+00 : f32
    %19 = vector.broadcast %cst_7 : f32 to vector<8x128xf32>
    %20 = arith.subf %19, %7 : vector<8x128xf32>
    %cst_8 = arith.constant 0.000000e+00 : f32
    %21 = vector.broadcast %cst_8 : f32 to vector<8x128xf32>
    %22 = arith.maximumf %20, %21 : vector<8x128xf32>
    %cst_9 = arith.constant 0.000000e+00 : f32
    %23 = vector.broadcast %cst_9 : f32 to vector<8x128xf32>
    %24 = arith.maximumf %14, %23 : vector<8x128xf32>
    %25 = arith.addf %22, %24 : vector<8x128xf32>
    %cst_10 = arith.constant 0.693147182 : f32
    %26 = vector.broadcast %cst_10 : f32 to vector<8x128xf32>
    %27 = arith.subf %25, %26 : vector<8x128xf32>
    %28 = arith.addf %11, %18 : vector<8x128xf32>
    %29 = arith.mulf %11, %18 : vector<8x128xf32>
    %30 = arith.addf %28, %29 : vector<8x128xf32>
    %31 = math.log1p %30 : vector<8x128xf32>
    %32 = arith.addf %27, %31 : vector<8x128xf32>
    %c1_i32 = arith.constant 1 : i32
    %33 = arith.muli %arg0, %c1_i32 : i32
    %34 = arith.addi %33, %arg1 : i32
    %c0_i32_11 = arith.constant 0 : i32
    %35 = arith.cmpi slt, %34, %c0_i32_11 : i32
    %36 = arith.extui %35 : i1 to i32
    %c0_i32_12 = arith.constant 0 : i32
    %37 = arith.cmpi ne, %36, %c0_i32_12 : i32
    scf.if %37 {
      %c0_14 = arith.constant 0 : index
      %c0_15 = arith.constant 0 : index
      %41 = vector.load %arg4[%c0_14, %c0_15] : memref<8x128xf32, #tpu.memory_space<vmem>>, vector<8x128xf32>
      %42 = vector.shape_cast %32 : vector<8x128xf32> to vector<1x8x128xf32>
      %cst_16 = arith.constant dense<0.000000e+00> : vector<8x128xf32>
      %43 = vector.multi_reduction <add>, %42, %cst_16 [0] : vector<1x8x128xf32> to vector<8x128xf32>
      %44 = arith.addf %41, %43 : vector<8x128xf32>
      %c0_17 = arith.constant 0 : index
      %c0_18 = arith.constant 0 : index
      %45 = vector.load %arg4[%c0_17, %c0_18] : memref<8x128xf32, #tpu.memory_space<vmem>>, vector<8x128xf32>
      tpu.vector_store %arg4[%c0_17, %c0_18], %44 {strides = array<i32>} : memref<8x128xf32, #tpu.memory_space<vmem>>, vector<8x128xf32>,
    } else {
    }
    %true = arith.constant true
    %38 = arith.xori %35, %true : i1
    %39 = arith.extui %38 : i1 to i32
    %c0_i32_13 = arith.constant 0 : i32
    %40 = arith.cmpi ne, %39, %c0_i32_13 : i32
    scf.if %40 {
      %c8_i32 = arith.constant 8 : i32
      %41 = arith.muli %34, %c8_i32 : i32
      %42 = tpu.iota {dimensions = array<i32: 0>} : vector<8x1xi32>
      %43 = vector.broadcast %41 : i32 to vector<8x1xi32>
      %44 = arith.addi %43, %42 : vector<8x1xi32>
      %c7_i32 = arith.constant 7 : i32
      %45 = vector.broadcast %c7_i32 : i32 to vector<8x1xi32>
      %46 = arith.cmpi slt, %44, %45 : vector<8x1xi32>
      %cst_14 = arith.constant 0.000000e+00 : f32
      %47 = vector.shape_cast %46 : vector<8x1xi1> to vector<8x1xi1>
      %48 = vector.broadcast %47 : vector<8x1xi1> to vector<8x128xi1>
      %49 = vector.broadcast %cst_14 : f32 to vector<8x128xf32>
      %50 = arith.select %48, %32, %49 : vector<8x128xi1>, vector<8x128xf32>
      %c0_15 = arith.constant 0 : index
      %c0_16 = arith.constant 0 : index
      %51 = vector.load %arg4[%c0_15, %c0_16] : memref<8x128xf32, #tpu.memory_space<vmem>>, vector<8x128xf32>
      %52 = vector.shape_cast %50 : vector<8x128xf32> to vector<1x8x128xf32>
      %cst_17 = arith.constant dense<0.000000e+00> : vector<8x128xf32>
      %53 = vector.multi_reduction <add>, %52, %cst_17 [0] : vector<1x8x128xf32> to vector<8x128xf32>
      %54 = arith.addf %51, %53 : vector<8x128xf32>
      %c0_18 = arith.constant 0 : index
      %c0_19 = arith.constant 0 : index
      %55 = vector.load %arg4[%c0_18, %c0_19] : memref<8x128xf32, #tpu.memory_space<vmem>>, vector<8x128xf32>
      tpu.vector_store %arg4[%c0_18, %c0_19], %54 {strides = array<i32>} : memref<8x128xf32, #tpu.memory_space<vmem>>, vector<8x128xf32>,
    } else {
    }
    return
  }
  func.func @transform_0(%arg0: i32, %arg1: i32) -> (i32, i32) {
    %c1_i32 = arith.constant 1 : i32
    %0 = arith.muli %arg0, %c1_i32 : i32
    %1 = arith.addi %0, %arg1 : i32
    %c0_i32 = arith.constant 0 : i32
    %2 = arith.minsi %1, %c0_i32 : i32
    %c0_i32_0 = arith.constant 0 : i32
    %c0_i32_1 = arith.constant 0 : i32
    return %2, %c0_i32_0 : i32, i32
  }
  func.func @transform_1(%arg0: i32, %arg1: i32) -> (i32, i32) {
    %c1_i32 = arith.constant 1 : i32
    %0 = arith.muli %arg0, %c1_i32 : i32
    %1 = arith.addi %0, %arg1 : i32
    %c0_i32 = arith.constant 0 : i32
    %2 = arith.minsi %1, %c0_i32 : i32
    %c0_i32_0 = arith.constant 0 : i32
    %c0_i32_1 = arith.constant 0 : i32
    return %2, %c0_i32_0 : i32, i32
  }
  func.func @transform_2(%arg0: i32, %arg1: i32) -> (i32, i32) {
    %c0_i32 = arith.constant 0 : i32
    %c0_i32_0 = arith.constant 0 : i32
    return %arg0, %c0_i32 : i32, i32
  }
}

</mosaic_0001>

<llo_original>
// kernel: tpu_custom_call.1
$region0: #{tpu_custom_call.1}
  #allocation0 [shape = 'u32[]', space=smem, size = 0x4, offset = 0x4, fixed_abs, tag = 'smem constant byte address 0x4 - core index']
  #allocation1 [shape = 'u32[144,128]{1,0:T(1,128)}', space=vmem, size = 0x12000, scoped, tag = 'internal scratch']
  %s0 = inlined_call_operand.hbm [shape: f32[7,128], index: 0, kind: input, shape index: {}]
  %s1 = inlined_call_operand.hbm [shape: f32[7,128], index: 1, kind: input, shape index: {}]
  %s2 = inlined_call_operand.hbm [shape: f32[8,128], index: 2, kind: output, shape index: {}]
  %s3 = sld [smem:[#allocation0]]
  $region38: #{tpu_custom_call.1} parent=0
    _
  %s5 = ssub.s32 1, %s3
  %s6 = scalar_select 0, %s5, %s3
  $region1: #{tpu_custom_call.1} parent=0
    #allocation2 [shape = 'u8[4096]{0}', space=vmem, size = 0x1000, scoped, tag = 'input window, operand 0, single buffered']
    #allocation3 [shape = 's32[1]{0}', space=sflag, size = 0x4, scoped, tag = 'scoped memory for tpu_custom_call.1']
    #allocation4 [shape = 's32[1]{0}', space=sflag, size = 0x4, scoped, tag = 'scoped memory for tpu_custom_call.1']
    #allocation5 [shape = 'u8[4096]{0}', space=vmem, size = 0x1000, scoped, tag = 'input window, operand 1, single buffered']
    #allocation6 [shape = 's32[1]{0}', space=sflag, size = 0x4, scoped, tag = 'scoped memory for tpu_custom_call.1']
    #allocation7 [shape = 'u8[4096]{0}', space=vmem, size = 0x1000, scoped, tag = 'output window, operand 0, single buffered']
    %7 = vsyncpa [#allocation3], 0
    %8 = vsyncpa [#allocation6], 0
    %9 = vsyncpa [#allocation4], 0
    // Predicated region
    $region2: #{tpu_custom_call.1} parent=1 // pred_check
      _
    $region3: #{tpu_custom_call.1} parent=1 // pred_check_branch
      %11 = sbr.rel (0) target = $region5
    $region4: #{tpu_custom_call.1} parent=1 // pred_region
      %s12 = sadd.s32 0, 0
      %p13 = scmp.lt.s32.totalorder %s12, 0
      %s14 = scalar_select %p13, %s12, 0
      %s16 = ssub.s32 128, 128
      %17 = vsyncadd [#allocation3], %s16
      %s18 = smul.addr %s14, 128
      %s19 = scalar_lea.hbm %s0, %s18
      %s21 = sshll.u32 [#allocation2], 4
      %s22 = int_to_ptr.vmem [resolvable:$true] %s21
      %24 = dma.hbm_to_vmem [thread:$0]  %s19, 128, %s22, [#allocation3]
    $region5: #{tpu_custom_call.1} parent=1 // pred_fallthru
      _
    // Predicated region
    $region6: #{tpu_custom_call.1} parent=1 // pred_check
      _
    $region7: #{tpu_custom_call.1} parent=1 // pred_check_branch
      %26 = sbr.rel (0) target = $region9
    $region8: #{tpu_custom_call.1} parent=1 // pred_region
      %s27 = sadd.s32 0, 0
      %p28 = scmp.lt.s32.totalorder %s27, 0
      %s29 = scalar_select %p28, %s27, 0
      %s31 = ssub.s32 128, 128
      %32 = vsyncadd [#allocation6], %s31
      %s33 = smul.addr %s29, 128
      %s34 = scalar_lea.hbm %s1, %s33
      %s36 = sshll.u32 [#allocation5], 4
      %s37 = int_to_ptr.vmem [resolvable:$true] %s36
      %39 = dma.hbm_to_vmem [thread:$0]  %s34, 128, %s37, [#allocation6]
    $region9: #{tpu_custom_call.1} parent=1 // pred_fallthru
      _
    // Predicated region
    $region10: #{tpu_custom_call.1} parent=1 // pred_check
      _
    $region11: #{tpu_custom_call.1} parent=1 // pred_check_branch
      %41 = sbr.rel (0) target = $region13
    $region12: #{tpu_custom_call.1} parent=1 // pred_region
      %42 = dma.done [#allocation3], 128
    $region13: #{tpu_custom_call.1} parent=1 // pred_fallthru
      _
    // Predicated region
    $region14: #{tpu_custom_call.1} parent=1 // pred_check
      _
    $region15: #{tpu_custom_call.1} parent=1 // pred_check_branch
      %44 = sbr.rel (0) target = $region17
    $region16: #{tpu_custom_call.1} parent=1 // pred_region
      %45 = dma.done [#allocation6], 128
    $region17: #{tpu_custom_call.1} parent=1 // pred_fallthru
      _
    %s46 = sadd.s32 0, 0
    %p47 = scmp.lt.s32.totalorder %s46, 0
    %s48 = scalar_select %p47, %s46, 0
    %s49 = sadd.s32 0, 0
    %p50 = scmp.lt.s32.totalorder %s49, 0
    %s51 = scalar_select %p50, %s49, 0
    %p52 = scmp.eq.s32.totalorder 0, 0
    // Predicated region
    $region18: #{tpu_custom_call.1} parent=1 // pred_check
      %p53 = pneg %p52
    $region19: #{tpu_custom_call.1} parent=1 // pred_check_branch
      %55 = sbr.rel (%p53) target = $region21
    $region20: #{tpu_custom_call.1} parent=1 // pred_region
      %56 = vst [vmem:[#allocation7] sm:$0xff] 0.0
    $region21: #{tpu_custom_call.1} parent=1 // pred_fallthru
      _
    %v57 = vld [vmem:[#allocation2] sm:$0xff]
    %v58 = vld [vmem:[#allocation5] sm:$0xff]
    %v59 = vsub.f32 %v57, %v58
    %v60 = vmax.f32 %v59, -18.420681
    %v61 = vand.u32 2147483647, %v60
    %v62 = vsub.f32 0.0, %v61
    %v63 = vmul.f32 %v62, 1.442695
    %v64 = vpow.pop %v63
    %v65 = vadd.f32 %v57, %v58
    %v66 = vmul.f32 %v65, 2.0
    %v67 = vand.u32 2147483647, %v66
    %v68 = vsub.f32 0.0, %v67
    %v69 = vmul.f32 %v68, 1.442695
    %v70 = vpow.pop %v69
    %v71 = vsub.f32 0.0, %v60
    %v72 = vmax.f32 %v71, 0.0
    %v73 = vmax.f32 %v66, 0.0
    %v74 = vadd.f32 %v72, %v73
    %v75 = vsub.f32 %v74, 0.6931472
    %v76 = vadd.f32 %v64, %v70
    %v77 = vmul.f32 %v64, %v70
    %v78 = vadd.f32 %v76, %v77
    %v79 = vadd.f32 %v78, 1.0
    %v80 = vlog2.pop %v79
    %v81 = vmul.f32 %v80, 0.6931472
    %v82 = vmul.f32 -0.5, %v78
    %v83 = vadd.f32 %v82, 1.0
    %v84 = vmul.f32 %v83, %v78
    %v85 = vand.u32 2147483647, %v78
    %vm86 = vcmp.lt.f32.partialorder %v85, 0.0004427343
    %v87 = vsel %vm86, %v84, %v81
    %v88 = vadd.f32 %v75, %v87
    %s89 = sadd.s32 0, 0
    %p90 = scmp.lt.s32.totalorder %s89, 0
    // Predicated region
    $region22: #{tpu_custom_call.1} parent=1 // pred_check
      %p91 = pneg %p90
    $region23: #{tpu_custom_call.1} parent=1 // pred_check_branch
      %93 = sbr.rel (%p91) target = $region25
    $region24: #{tpu_custom_call.1} parent=1 // pred_region
      %v94 = vld [vmem:[#allocation7] sm:$0xff]
      %v95 = vadd.f32 %v88, 0.0
      %v96 = vadd.f32 %v94, %v95
      %97 = vst [vmem:[#allocation7] sm:$0xff] %v96
    $region25: #{tpu_custom_call.1} parent=1 // pred_fallthru
      _
    %p98 = scmp.ge.s32.totalorder %s89, 0
    // Predicated region
    $region26: #{tpu_custom_call.1} parent=1 // pred_check
      %p99 = pneg %p98
    $region27: #{tpu_custom_call.1} parent=1 // pred_check_branch
      %101 = sbr.rel (%p99) target = $region29
    $region28: #{tpu_custom_call.1} parent=1 // pred_region
      %s102 = smul.u32 %s89, 8
      %v103 = vlaneseq
      %v104 = vshrl.u32 %v103, 7
      %v105 = vstv %s102
      %v106 = vadd.s32 %v105, %v104
      %vm107 = vcmp.lt.s32.totalorder %v106, 7
      %v108 = vsel %vm107, 1, 0
      %vm109 = vcmp.eq.s32.totalorder %v108, 1
      %v110 = vsel %vm109, %v88, 0.0
      %v111 = vld [vmem:[#allocation7] sm:$0xff]
      %v112 = vadd.f32 %v110, 0.0
      %v113 = vadd.f32 %v111, %v112
      %114 = vst [vmem:[#allocation7] sm:$0xff] %v113
    $region29: #{tpu_custom_call.1} parent=1 // pred_fallthru
      _
    // Predicated region
    $region30: #{tpu_custom_call.1} parent=1 // pred_check
      _
    $region31: #{tpu_custom_call.1} parent=1 // pred_check_branch
      %116 = sbr.rel (0) target = $region33
    $region32: #{tpu_custom_call.1} parent=1 // pred_region
      %s118 = ssub.s32 128, 128
      %119 = vsyncadd [#allocation4], %s118
      %s121 = sshll.u32 [#allocation7], 4
      %s122 = int_to_ptr.vmem [resolvable:$true] %s121
      %124 = dma.vmem_to_hbm [thread:$0]  %s122, 128, %s2, [#allocation4]
    $region33: #{tpu_custom_call.1} parent=1 // pred_fallthru
      _
    // Predicated region
    $region34: #{tpu_custom_call.1} parent=1 // pred_check
      _
    $region35: #{tpu_custom_call.1} parent=1 // pred_check_branch
      %126 = sbr.rel (0) target = $region37
    $region36: #{tpu_custom_call.1} parent=1 // pred_region
      %127 = dma.done [#allocation4], 128
    $region37: #{tpu_custom_call.1} parent=1 // pred_fallthru
      _
    %128 = vsyncpa [#allocation3], 1
    %129 = vsyncpa [#allocation6], 1
    %130 = vsyncpa [#allocation4], 1

</llo_original>
